<compile_context>
chip_gen: v6e
topology: v6e:2x2x1
jax: 0.10.0
libtpu: 0.0.40
codegen_flags: <defaults>
</compile_context>

<pallas_src>
import functools

import jax
import jax.numpy as jnp
from jax import lax
from jax.experimental import pallas as pl
from jax.experimental.pallas import tpu as pltpu


def _dilated_block_kernel(x_ref, w_ref, b_ref, head_ref, tail_ref, o_ref, *,
                          dilation, stacked):
    # x_ref:    (b_blk, C, T) input block (also the residual)
    # w_ref:    (C, 3C) bf16 fused weights   [stacked=True]
    #           (3, C, C) bf16 per-tap weights [stacked=False]
    # b_ref:    (C, 1)  f32 fused bias (w2 @ b1 + b2)
    # head_ref: (1, T)  f32 mask, 1.0 where t >= dilation      (x[t-d] valid)
    # tail_ref: (1, T)  f32 mask, 1.0 where t <  T - dilation  (x[t+d] valid)
    # o_ref:    (b_blk, C, T)
    b_blk, c, t = x_ref.shape
    d = dilation
    sr = d % t            # right roll: puts x[t-d] at position t
    sl = (t - d) % t      # right roll by T-d == left roll by d: x[t+d] at t

    w = w_ref[...]        # hoisted out of the batch loop
    bias = b_ref[...]
    head = head_ref[...]
    tail = tail_ref[...]

    for b in range(b_blk):                         # small static unroll
        x32 = x_ref[b].astype(jnp.float32)         # (C, T), read exactly once
        xm32 = (pltpu.roll(x32, sr, axis=1) if sr else x32) * head
        xp32 = (pltpu.roll(x32, sl, axis=1) if sl else x32) * tail

        xb = x32.astype(jnp.bfloat16)
        xm = xm32.astype(jnp.bfloat16)
        xp = xp32.astype(jnp.bfloat16)

        if stacked:
            # One K=3C MXU contraction.
            stack = jnp.concatenate([xm, xb, xp], axis=0)       # (3C, T) bf16
            y = jnp.dot(w, stack, preferred_element_type=jnp.float32)
        else:
            # Three accumulating dots; no (3C, T) temp materialized.
            y = jnp.dot(w[0], xm, preferred_element_type=jnp.float32)
            y = y + jnp.dot(w[1], xb, preferred_element_type=jnp.float32)
            y = y + jnp.dot(w[2], xp, preferred_element_type=jnp.float32)

        y = y + bias + x32                          # bias + residual (f32)
        y = jnp.where(y >= 0.0, y, 0.2 * y)         # leaky_relu(0.2)
        o_ref[b] = y.astype(o_ref.dtype)


def _pick_batch_block(n, c, t, itemsize):
    """Batches per grid step: amortize step overhead, keep grid >= 2, fit VMEM."""
    per_batch = c * t * max(itemsize, 4)      # f32 intermediates dominate
    budget = 4 * 1024 * 1024                  # per x block (well under 32 MiB)
    cap = max(1, n // 2)                      # keep >= 2 grid iterations
    b = max(1, min(n, 8, cap, budget // per_batch))
    while n % b:
        b -= 1
    return max(b, 1)


def dilated_block(x, w1, b1, w2, b2, dilation):
    """x: (N, C, T); w1: (C, C, 3); b1: (C,); w2: (C, C); b2: (C,)."""
    n, c, t = x.shape
    f32 = jnp.float32

    # Fold the 1x1 conv into the dilated conv IN F32 (both are linear):
    #   y = w2 @ (sum_k w1[:,:,k] @ shift_k(x) + b1) + b2 + x
    #     = sum_k (w2 @ w1[:,:,k]) @ shift_k(x) + (w2 @ b1 + b2) + x
    w_taps = jnp.einsum("pc,cik->pki", w2.astype(f32), w1.astype(f32))  # (C,3,C)
    b_eff = (w2.astype(f32) @ b1.astype(f32) + b2.astype(f32)).reshape(c, 1)

    # Stacked single-dot form only while the bf16 stack is a handful of vregs.
    stacked = (3 * c * t * 2) <= (128 * 1024)
    if stacked:
        w_eff = w_taps.reshape(c, 3 * c).astype(jnp.bfloat16)            # (C, 3C)
        w_spec = pl.BlockSpec((c, 3 * c), lambda i: (0, 0))
    else:
        w_eff = jnp.transpose(w_taps, (1, 0, 2)).astype(jnp.bfloat16)    # (3, C, C)
        w_spec = pl.BlockSpec((3, c, c), lambda i: (0, 0, 0))

    # Precomputed boundary masks (tap validity), applied with a multiply.
    col = jnp.arange(t)
    head = (col >= dilation).astype(f32).reshape(1, t)
    tail = (col < t - dilation).astype(f32).reshape(1, t)

    b_blk = _pick_batch_block(n, c, t, jnp.dtype(x.dtype).itemsize)

    kernel = functools.partial(_dilated_block_kernel, dilation=dilation,
                               stacked=stacked)

    return pl.pallas_call(
        kernel,
        out_shape=jax.ShapeDtypeStruct((n, c, t), x.dtype),
        grid=(n // b_blk,),
        in_specs=[
            pl.BlockSpec((b_blk, c, t), lambda i: (i, 0, 0)),  # x (taps + residual)
            w_spec,                                            # fused bf16 weights
            pl.BlockSpec((c, 1), lambda i: (0, 0)),            # fused bias (f32)
            pl.BlockSpec((1, t), lambda i: (0, 0)),            # head mask
            pl.BlockSpec((1, t), lambda i: (0, 0)),            # tail mask
        ],
        out_specs=pl.BlockSpec((b_blk, c, t), lambda i: (i, 0, 0)),
        compiler_params=pltpu.CompilerParams(
            dimension_semantics=("parallel",),
            vmem_limit_bytes=32 * 1024 * 1024),
    )(x, w_eff, b_eff, head, tail)


def dilated_block_ref(x, w1, b1, w2, b2, dilation):
    """Pure-JAX f32 reference matching the PyTorch forward."""
    y = lax.conv_general_dilated(
        x, w1, window_strides=(1,), padding=[(dilation, dilation)],
        rhs_dilation=(dilation,), dimension_numbers=("NCH", "OIH", "NCH"))
    y = y + b1[None, :, None]
    y = jnp.einsum("oc,nct->not", w2, y) + b2[None, :, None]
    y = y + x
    return jnp.where(y >= 0, y, 0.2 * y)


def _run_case(key, n, c, t, dilation):
    k_x, k_w1, k_b1, k_w2, k_b2 = jax.random.split(key, 5)
    bound1 = 1.0 / (c * 3) ** 0.5
    bound2 = 1.0 / c ** 0.5
    x = jax.random.normal(k_x, (n, c, t), jnp.float32)
    w1 = jax.random.uniform(k_w1, (c, c, 3), jnp.float32, -bound1, bound1)
    b1 = jax.random.uniform(k_b1, (c,), jnp.float32, -bound1, bound1)
    w2 = jax.random.uniform(k_w2, (c, c), jnp.float32, -bound2, bound2)
    b2 = jax.random.uniform(k_b2, (c,), jnp.float32, -bound2, bound2)

    out = jax.block_until_ready(dilated_block(x, w1, b1, w2, b2, dilation))
    ref = dilated_block_ref(x, w1, b1, w2, b2, dilation)
    assert out.shape == (n, c, t)
    # bf16 MXU operands -> loosened tolerance vs the f32 reference.
    assert jnp.allclose(out, ref, atol=3e-2, rtol=3e-2), \
        f"mismatch vs reference at shape {(n, c, t)}"


if __name__ == "__main__":
    key = jax.random.PRNGKey(0)
    k0, k1 = jax.random.split(key)
    # Primary small case (b_blk=1, stacked single-dot path).
    _run_case(k0, n=2, c=16, t=128, dilation=2)
    # Exercises b_blk>1 and the 3-accumulating-dots path (no concat temp).
    _run_case(k1, n=4, c=32, t=768, dilation=4)
    print("KERNEL_OK")
</pallas_src>

<mosaic_0001>
module attributes {stable_mosaic.version = 11 : i64} {
  func.func @_dilated_block_kernel(%arg0: i32, %arg1: memref<1x16x128xf32, #tpu.memory_space<vmem>>, %arg2: memref<16x48xbf16, #tpu.memory_space<vmem>>, %arg3: memref<16x1xf32, #tpu.memory_space<vmem>>, %arg4: memref<1x128xf32, #tpu.memory_space<vmem>>, %arg5: memref<1x128xf32, #tpu.memory_space<vmem>>, %arg6: memref<1x16x128xf32, #tpu.memory_space<vmem>>) attributes {dimension_semantics = [#tpu.dimension_semantics<parallel>], iteration_bounds = array<i64: 2>, scalar_prefetch = 0 : i64, scratch_operands = 0 : i64, tpu.core_type = #tpu.core_type<tc>, window_params = [{transform_indices = @transform_0, window_bounds = array<i64: 1, 16, 128>}, {pipeline_mode = #tpu.pipeline_mode<synchronous>, transform_indices = @transform_1, window_bounds = array<i64: 16, 48>}, {pipeline_mode = #tpu.pipeline_mode<synchronous>, transform_indices = @transform_2, window_bounds = array<i64: 16, 1>}, {pipeline_mode = #tpu.pipeline_mode<synchronous>, transform_indices = @transform_3, window_bounds = array<i64: 1, 128>}, {pipeline_mode = #tpu.pipeline_mode<synchronous>, transform_indices = @transform_4, window_bounds = array<i64: 1, 128>}, {transform_indices = @transform_5, window_bounds = array<i64: 1, 16, 128>}]} {
    %c0 = arith.constant 0 : index
    %c0_0 = arith.constant 0 : index
    %0 = vector.load %arg2[%c0, %c0_0] : memref<16x48xbf16, #tpu.memory_space<vmem>>, vector<16x48xbf16>
    %c0_1 = arith.constant 0 : index
    %c0_2 = arith.constant 0 : index
    %1 = vector.load %arg3[%c0_1, %c0_2] : memref<16x1xf32, #tpu.memory_space<vmem>>, vector<16x1xf32>
    %c0_3 = arith.constant 0 : index
    %c0_4 = arith.constant 0 : index
    %2 = vector.load %arg4[%c0_3, %c0_4] : memref<1x128xf32, #tpu.memory_space<vmem>>, vector<1x128xf32>
    %c0_5 = arith.constant 0 : index
    %c0_6 = arith.constant 0 : index
    %3 = vector.load %arg5[%c0_5, %c0_6] : memref<1x128xf32, #tpu.memory_space<vmem>>, vector<1x128xf32>
    %c0_7 = arith.constant 0 : index
    %c0_8 = arith.constant 0 : index
    %c0_9 = arith.constant 0 : index
    %4 = vector.load %arg1[%c0_7, %c0_8, %c0_9] : memref<1x16x128xf32, #tpu.memory_space<vmem>>, vector<1x16x128xf32>
    %5 = vector.shape_cast %4 : vector<1x16x128xf32> to vector<16x128xf32>
    %c2_i32 = arith.constant 2 : i32
    %6 = tpu.dynamic_rotate %5 by %c2_i32 dim 1 : vector<16x128xf32>, i32 -> vector<16x128xf32>
    %7 = vector.broadcast %2 : vector<1x128xf32> to vector<16x128xf32>
    %8 = arith.mulf %6, %7 : vector<16x128xf32>
    %c126_i32 = arith.constant 126 : i32
    %9 = tpu.dynamic_rotate %5 by %c126_i32 dim 1 : vector<16x128xf32>, i32 -> vector<16x128xf32>
    %10 = vector.broadcast %3 : vector<1x128xf32> to vector<16x128xf32>
    %11 = arith.mulf %9, %10 : vector<16x128xf32>
    %12 = arith.truncf %5 : vector<16x128xf32> to vector<16x128xbf16>
    %13 = arith.truncf %8 : vector<16x128xf32> to vector<16x128xbf16>
    %14 = arith.truncf %11 : vector<16x128xf32> to vector<16x128xbf16>
    %15 = tpu.concatenate %13, %12, %14 in 0 : vector<16x128xbf16>, vector<16x128xbf16>, vector<16x128xbf16> -> vector<48x128xbf16>
    %cst = arith.constant dense<0.000000e+00> : vector<16x128xf32>
    %16 = tpu.matmul %0, %15, %cst {dimension_numbers = #tpu.dot_dimension_numbers<[1], [0], [0], [1], [0, 0, 1, 1], [], []>} : vector<16x48xbf16>, vector<48x128xbf16>, vector<16x128xf32> -> vector<16x128xf32>
    %17 = vector.broadcast %1 : vector<16x1xf32> to vector<16x128xf32>
    %18 = arith.addf %16, %17 : vector<16x128xf32>
    %19 = arith.addf %18, %5 : vector<16x128xf32>
    %cst_10 = arith.constant 0.000000e+00 : f32
    %20 = vector.broadcast %cst_10 : f32 to vector<16x128xf32>
    %21 = arith.cmpf oge, %19, %20 : vector<16x128xf32>
    %cst_11 = arith.constant 2.000000e-01 : f32
    %22 = vector.broadcast %cst_11 : f32 to vector<16x128xf32>
    %23 = arith.mulf %22, %19 : vector<16x128xf32>
    %24 = arith.select %21, %19, %23 : vector<16x128xi1>, vector<16x128xf32>
    %c0_12 = arith.constant 0 : index
    %c0_13 = arith.constant 0 : index
    %c0_14 = arith.constant 0 : index
    %25 = vector.load %arg6[%c0_12, %c0_13, %c0_14] : memref<1x16x128xf32, #tpu.memory_space<vmem>>, vector<1x16x128xf32>
    %26 = vector.shape_cast %25 : vector<1x16x128xf32> to vector<16x128xf32>
    %27 = vector.shape_cast %24 : vector<16x128xf32> to vector<1x16x128xf32>
    tpu.vector_store %arg6[%c0_12, %c0_13, %c0_14], %27 {strides = array<i32>} : memref<1x16x128xf32, #tpu.memory_space<vmem>>, vector<1x16x128xf32>,
    return
  }
  func.func @transform_0(%arg0: i32) -> (i32, i32, i32) {
    %c0_i32 = arith.constant 0 : i32
    %c0_i32_0 = arith.constant 0 : i32
    %c0_i32_1 = arith.constant 0 : i32
    return %arg0, %c0_i32, %c0_i32_0 : i32, i32, i32
  }
  func.func @transform_1(%arg0: i32) -> (i32, i32) {
    %c0_i32 = arith.constant 0 : i32
    %c0_i32_0 = arith.constant 0 : i32
    %c0_i32_1 = arith.constant 0 : i32
    return %c0_i32, %c0_i32_0 : i32, i32
  }
  func.func @transform_2(%arg0: i32) -> (i32, i32) {
    %c0_i32 = arith.constant 0 : i32
    %c0_i32_0 = arith.constant 0 : i32
    %c0_i32_1 = arith.constant 0 : i32
    return %c0_i32, %c0_i32_0 : i32, i32
  }
  func.func @transform_3(%arg0: i32) -> (i32, i32) {
    %c0_i32 = arith.constant 0 : i32
    %c0_i32_0 = arith.constant 0 : i32
    %c0_i32_1 = arith.constant 0 : i32
    return %c0_i32, %c0_i32_0 : i32, i32
  }
  func.func @transform_4(%arg0: i32) -> (i32, i32) {
    %c0_i32 = arith.constant 0 : i32
    %c0_i32_0 = arith.constant 0 : i32
    %c0_i32_1 = arith.constant 0 : i32
    return %c0_i32, %c0_i32_0 : i32, i32
  }
  func.func @transform_5(%arg0: i32) -> (i32, i32, i32) {
    %c0_i32 = arith.constant 0 : i32
    %c0_i32_0 = arith.constant 0 : i32
    %c0_i32_1 = arith.constant 0 : i32
    return %arg0, %c0_i32, %c0_i32_0 : i32, i32, i32
  }
}

</mosaic_0001>

<llo_original>
// kernel: tpu_custom_call.1
$region0: #{tpu_custom_call.1}
  #allocation0 [shape = 'u32[]', space=smem, size = 0x4, offset = 0x4, fixed_abs, tag = 'smem constant byte address 0x4 - core index']
  #allocation1 [shape = 'u32[144,128]{1,0:T(1,128)}', space=vmem, size = 0x12000, scoped, tag = 'internal scratch']
  %s0 = inlined_call_operand.hbm [shape: f32[2,16,128], index: 0, kind: input, shape index: {}]
  %s1 = inlined_call_operand.vmem [shape: bf16[16,48], index: 1, kind: input, shape index: {}]
  %s2 = inlined_call_operand.vmem [shape: f32[16,1], index: 2, kind: input, shape index: {}]
  %s3 = inlined_call_operand.vmem [shape: f32[1,128], index: 3, kind: input, shape index: {}]
  %s4 = inlined_call_operand.vmem [shape: f32[1,128], index: 4, kind: input, shape index: {}]
  %s5 = inlined_call_operand.hbm [shape: f32[2,16,128], index: 5, kind: output, shape index: {}]
  %s6 = sld [smem:[#allocation0]]
  $region57: #{tpu_custom_call.1} parent=0
    _
  %s8 = ssub.s32 1, %s6
  %s9 = scalar_select 0, %s8, %s6
  $region1: #{tpu_custom_call.1} parent=0
    #allocation2 [shape = 'u8[16384]{0}', space=vmem, size = 0x4000, scoped, tag = 'input window, operand 0']
    #allocation3 [shape = 's32[2]{0}', space=sflag, size = 0x8, scoped, tag = 'scoped memory for tpu_custom_call.1']
    #allocation4 [shape = 's32[2]{0}', space=sflag, size = 0x8, scoped, tag = 'scoped memory for tpu_custom_call.1']
    #allocation5 [shape = 'u8[16384]{0}', space=vmem, size = 0x4000, scoped, tag = 'output window, operand 0']
    %10 = vsyncpa [#allocation3], 0
    %s11 = scalar_lea.sflag [#allocation3], 1
    %12 = vsyncpa %s11, 0
    %13 = vsyncpa [#allocation4], 0
    %s14 = scalar_lea.sflag [#allocation4], 1
    %15 = vsyncpa %s14, 0
    loop: start=0, step=1, limit=4
    $region2: #{tpu_custom_call.1} parent=1 // loop_pre_header
      _
    $region3: #{tpu_custom_call.1} parent=1 // loop_header
      %s17 = sphi 0, %s21
      %p18 = scmp.ge.s32.totalorder %s17, 4
      %s27 = sphi 0, %s29
      %s30 = sphi 0, %s27
      %s31 = sphi 0, %s30
      %s47 = sphi 0, %s31
      %s51 = sphi 0, %s51
      %s53 = sphi 0, %s51
      %s54 = sphi 0, %s53
      %s68 = sphi 0, %s54
      %s72 = sphi 0, %s72
      %s74 = sphi 0, %s72
      %s75 = sphi 0, %s74
      %s89 = sphi 0, %s75
      %s93 = sphi 0, %s93
      %s95 = sphi 0, %s93
      %s96 = sphi 0, %s95
      %s110 = sphi 0, %s96
      %s114 = sphi 0, %s114
      %s116 = sphi 0, %s114
      %s117 = sphi 0, %s116
      %s131 = sphi 0, %s117
      %s137 = sphi 0, %s139
      %s140 = sphi 0, %s137
      %s141 = sphi 0, %s140
      %s157 = sphi 0, %s141
    $region4: #{tpu_custom_call.1} parent=1 // loop_header_branch
      %20 = sbr.rel (%p18) target = $region8
    $region5: #{tpu_custom_call.1} parent=1 // loop_body
      %s22 = ssub.s32 %s17, 1
      %s23 = ssub.s32 %s17, 2
      %s24 = sadd.s32 %s17, 1
      %s25 = ssub.s32 %s17, %s24
      %p26 = scmp.eq.s32.totalorder %s25, 0
      %s28 = sadd.s32 %s27, 1
      %s29 = scalar_select %p26, %s27, %s28
      %p32 = pneg %p26
      %p33 = scmp.eq.s32.totalorder %s17, 1
      %p34 = por %p32, %p33
      %p35 = scmp.ne.s32.totalorder %s27, %s30
      %p36 = scmp.eq.s32.totalorder %s17, 0
      %p37 = por %p35, %p36
      %p38 = scmp.ne.s32.totalorder %s27, %s30
      %p39 = scmp.eq.s32.totalorder %s22, 1
      %p40 = por %p38, %p39
      %p41 = scmp.ne.s32.totalorder %s30, %s31
      %p42 = scmp.eq.s32.totalorder %s22, 0
      %p43 = por %p41, %p42
      %p44 = scmp.ne.s32.totalorder %s30, %s31
      %p45 = scmp.eq.s32.totalorder %s23, 1
      %p46 = por %p44, %p45
      %p48 = scmp.ne.s32.totalorder %s31, %s47
      %p49 = scmp.eq.s32.totalorder %s23, 0
      %p50 = por %p48, %p49
      %s52 = sadd.s32 %s51, 1
      %p55 = scmp.eq.s32.totalorder %s17, 1
      %p56 = scmp.ne.s32.totalorder %s51, %s53
      %p57 = scmp.eq.s32.totalorder %s17, 0
      %p58 = por %p56, %p57
      %p59 = scmp.ne.s32.totalorder %s51, %s53
      %p60 = scmp.eq.s32.totalorder %s22, 1
      %p61 = por %p59, %p60
      %p62 = scmp.ne.s32.totalorder %s53, %s54
      %p63 = scmp.eq.s32.totalorder %s22, 0
      %p64 = por %p62, %p63
      %p65 = scmp.ne.s32.totalorder %s53, %s54
      %p66 = scmp.eq.s32.totalorder %s23, 1
      %p67 = por %p65, %p66
      %p69 = scmp.ne.s32.totalorder %s54, %s68
      %p70 = scmp.eq.s32.totalorder %s23, 0
      %p71 = por %p69, %p70
      %s73 = sadd.s32 %s72, 1
      %p76 = scmp.eq.s32.totalorder %s17, 1
      %p77 = scmp.ne.s32.totalorder %s72, %s74
      %p78 = scmp.eq.s32.totalorder %s17, 0
      %p79 = por %p77, %p78
      %p80 = scmp.ne.s32.totalorder %s72, %s74
      %p81 = scmp.eq.s32.totalorder %s22, 1
      %p82 = por %p80, %p81
      %p83 = scmp.ne.s32.totalorder %s74, %s75
      %p84 = scmp.eq.s32.totalorder %s22, 0
      %p85 = por %p83, %p84
      %p86 = scmp.ne.s32.totalorder %s74, %s75
      %p87 = scmp.eq.s32.totalorder %s23, 1
      %p88 = por %p86, %p87
      %p90 = scmp.ne.s32.totalorder %s75, %s89
      %p91 = scmp.eq.s32.totalorder %s23, 0
      %p92 = por %p90, %p91
      %s94 = sadd.s32 %s93, 1
      %p97 = scmp.eq.s32.totalorder %s17, 1
      %p98 = scmp.ne.s32.totalorder %s93, %s95
      %p99 = scmp.eq.s32.totalorder %s17, 0
      %p100 = por %p98, %p99
      %p101 = scmp.ne.s32.totalorder %s93, %s95
      %p102 = scmp.eq.s32.totalorder %s22, 1
      %p103 = por %p101, %p102
      %p104 = scmp.ne.s32.totalorder %s95, %s96
      %p105 = scmp.eq.s32.totalorder %s22, 0
      %p106 = por %p104, %p105
      %p107 = scmp.ne.s32.totalorder %s95, %s96
      %p108 = scmp.eq.s32.totalorder %s23, 1
      %p109 = por %p107, %p108
      %p111 = scmp.ne.s32.totalorder %s96, %s110
      %p112 = scmp.eq.s32.totalorder %s23, 0
      %p113 = por %p111, %p112
      %s115 = sadd.s32 %s114, 1
      %p118 = scmp.eq.s32.totalorder %s17, 1
      %p119 = scmp.ne.s32.totalorder %s114, %s116
      %p120 = scmp.eq.s32.totalorder %s17, 0
      %p121 = por %p119, %p120
      %p122 = scmp.ne.s32.totalorder %s114, %s116
      %p123 = scmp.eq.s32.totalorder %s22, 1
      %p124 = por %p122, %p123
      %p125 = scmp.ne.s32.totalorder %s116, %s117
      %p126 = scmp.eq.s32.totalorder %s22, 0
      %p127 = por %p125, %p126
      %p128 = scmp.ne.s32.totalorder %s116, %s117
      %p129 = scmp.eq.s32.totalorder %s23, 1
      %p130 = por %p128, %p129
      %p132 = scmp.ne.s32.totalorder %s117, %s131
      %p133 = scmp.eq.s32.totalorder %s23, 0
      %p134 = por %p132, %p133
      %s135 = ssub.s32 %s17, %s24
      %p136 = scmp.eq.s32.totalorder %s135, 0
      %s138 = sadd.s32 %s137, 1
      %s139 = scalar_select %p136, %s137, %s138
      %p142 = pneg %p136
      %p143 = scmp.eq.s32.totalorder %s17, 1
      %p144 = por %p142, %p143
      %p145 = scmp.ne.s32.totalorder %s137, %s140
      %p146 = scmp.eq.s32.totalorder %s17, 0
      %p147 = por %p145, %p146
      %p148 = scmp.ne.s32.totalorder %s137, %s140
      %p149 = scmp.eq.s32.totalorder %s22, 1
      %p150 = por %p148, %p149
      %p151 = scmp.ne.s32.totalorder %s140, %s141
      %p152 = scmp.eq.s32.totalorder %s22, 0
      %p153 = por %p151, %p152
      %p154 = scmp.ne.s32.totalorder %s140, %s141
      %p155 = scmp.eq.s32.totalorder %s23, 1
      %p156 = por %p154, %p155
      %p158 = scmp.ne.s32.totalorder %s141, %s157
      %p159 = scmp.eq.s32.totalorder %s23, 0
      %p160 = por %p158, %p159
      %p161 = scmp.le.s32.totalorder 1, %s17
      %p162 = scmp.lt.s32.totalorder %s17, 3
      %p163 = pnand %p161, %p162
      %p164 = pneg %p163
      // Predicated region
      $region9: #{tpu_custom_call.1} parent=5 // pred_check
        _
      $region10: #{tpu_custom_call.1} parent=5 // pred_check_branch
        %166 = sbr.rel (%p163) target = $region12
      $region11: #{tpu_custom_call.1} parent=5 // pred_region
        %s167 = ssub.s32 %s17, 1
        // Predicated region
        $region13: #{tpu_custom_call.1} parent=11 // pred_check
          %p168 = pneg %p64
        $region14: #{tpu_custom_call.1} parent=11 // pred_check_branch
          %170 = sbr.rel (%p168) target = $region16
        $region15: #{tpu_custom_call.1} parent=11 // pred_region
          _
        $region16: #{tpu_custom_call.1} parent=11 // pred_fallthru
          _
        // Predicated region
        $region17: #{tpu_custom_call.1} parent=11 // pred_check
          %p171 = pneg %p85
        $region18: #{tpu_custom_call.1} parent=11 // pred_check_branch
          %173 = sbr.rel (%p171) target = $region20
        $region19: #{tpu_custom_call.1} parent=11 // pred_region
          _
        $region20: #{tpu_custom_call.1} parent=11 // pred_fallthru
          _
        // Predicated region
        $region21: #{tpu_custom_call.1} parent=11 // pred_check
          %p174 = pneg %p106
        $region22: #{tpu_custom_call.1} parent=11 // pred_check_branch
          %176 = sbr.rel (%p174) target = $region24
        $region23: #{tpu_custom_call.1} parent=11 // pred_region
          _
        $region24: #{tpu_custom_call.1} parent=11 // pred_fallthru
          _
        // Predicated region
        $region25: #{tpu_custom_call.1} parent=11 // pred_check
          %p177 = pneg %p127
        $region26: #{tpu_custom_call.1} parent=11 // pred_check_branch
          %179 = sbr.rel (%p177) target = $region28
        $region27: #{tpu_custom_call.1} parent=11 // pred_region
          _
        $region28: #{tpu_custom_call.1} parent=11 // pred_fallthru
          _
      $region12: #{tpu_custom_call.1} parent=5 // pred_fallthru
        _
      %p180 = scmp.lt.s32.totalorder %s17, 2
      // Predicated region
      $region29: #{tpu_custom_call.1} parent=5 // pred_check
        %p181 = pneg %p180
      $region30: #{tpu_custom_call.1} parent=5 // pred_check_branch
        %183 = sbr.rel (%p181) target = $region32
      $region31: #{tpu_custom_call.1} parent=5 // pred_region
        // Predicated region
        $region33: #{tpu_custom_call.1} parent=31 // pred_check
          %p184 = pneg %p37
        $region34: #{tpu_custom_call.1} parent=31 // pred_check_branch
          %186 = sbr.rel (%p184) target = $region36
        $region35: #{tpu_custom_call.1} parent=31 // pred_region
          %s187 = sand.u32 %s27, 1
          %s188 = scalar_lea.sflag [#allocation3], %s187
          %s189 = sand.u32 %s27, 1
          %s190 = smul.addr %s189, 16
          %s191 = scalar_lea.vmem [#allocation2], %s190
          %s193 = ssub.s32 256, 256
          %194 = vsyncadd %s188, %s193
          %s195 = smul.addr %s17, 2
          %s196 = smul.addr %s195, 128
          %s197 = scalar_lea.hbm %s0, %s196
          %s198 = sshll.u32 %s191, 4
          %s199 = int_to_ptr.vmem [resolvable:$true] %s198
          %204 = dma.hbm_to_vmem [thread:$0]  %s197, 256, %s199, %s188, 128, 128, 8
        $region36: #{tpu_custom_call.1} parent=31 // pred_fallthru
          _
      $region32: #{tpu_custom_call.1} parent=5 // pred_fallthru
        _
      %p205 = scmp.le.s32.totalorder 1, %s17
      %p206 = scmp.lt.s32.totalorder %s17, 3
      %p207 = pnand %p205, %p206
      %p208 = pneg %p207
      // Predicated region
      $region37: #{tpu_custom_call.1} parent=5 // pred_check
        _
      $region38: #{tpu_custom_call.1} parent=5 // pred_check_branch
        %210 = sbr.rel (%p207) target = $region40
      $region39: #{tpu_custom_call.1} parent=5 // pred_region
        %s211 = ssub.s32 %s17, 1
        %s212 = sand.u32 %s30, 1
        %s213 = scalar_lea.sflag [#allocation3], %s212
        %s214 = sand.u32 %s30, 1
        %s215 = smul.addr %s214, 16
        %s216 = scalar_lea.vmem [#allocation2], %s215
        // Predicated region
        $region41: #{tpu_custom_call.1} parent=39 // pred_check
          %p217 = pneg %p43
        $region42: #{tpu_custom_call.1} parent=39 // pred_check_branch
          %219 = sbr.rel (%p217) target = $region44
        $region43: #{tpu_custom_call.1} parent=39 // pred_region
          %220 = dma.done %s213, 256
        $region44: #{tpu_custom_call.1} parent=39 // pred_fallthru
          _
        %s221 = sand.u32 %s30, 1
        %s222 = scalar_lea.sflag [#allocation3], %s221
        %s223 = sand.u32 %s30, 1
        %s224 = smul.addr %s223, 16
        %s225 = scalar_lea.vmem [#allocation2], %s224
        %p226 = pneg %p43
        %p227 = pneg %p40
        %p228 = pneg %p64
        %p229 = pneg %p61
        %p230 = pneg %p85
        %p231 = pneg %p82
        %p232 = pneg %p106
        %p233 = pneg %p103
        %p234 = pneg %p127
        %p235 = pneg %p124
        %p236 = pneg %p153
        %p237 = pneg %p150
        %s238 = sand.u32 %s140, 1
        %s239 = scalar_lea.sflag [#allocation4], %s238
        %s240 = sand.u32 %s140, 1
        %s241 = smul.addr %s240, 16
        %s242 = scalar_lea.vmem [#allocation5], %s241
        %v244 = vld [vmem:[%s1] sm:$0xf]
        %v245 = vld [vmem:[%s1 + $0x4] sm:$0xf]
        %v246 = vld [vmem:[%s2] sm:$0xff]
        %v247 = vld [vmem:[%s2 + $0x8] sm:$0xff]
        %v248 = vld [vmem:[%s3] sm:$0x1]
        %v249 = vld [vmem:[%s4] sm:$0x1]
        %v250 = vld [vmem:[%s216] sm:$0xff]
        %v251 = vld [vmem:[%s216 + $0x8] sm:$0xff]
        %252 = vrot.lane.b32.xlu0 %v250, 2
        %v253 = vpop.permute.xlu0 %252
        %254 = vrot.lane.b32.xlu0 %v251, 2
        %v255 = vpop.permute.xlu0 %254
        %v257 = vlaneseq
        %v258 = vshrl.u32 %v257, 7
        %v259 = vsub.s32 0, %v258
        %v260 = vrot.slane %v248, %v259
        %v262 = vmul.f32 %v253, %v260
        %v263 = vmul.f32 %v255, %v260
        %264 = vrot.lane.b32.xlu0 %v250, 126
        %v265 = vpop.permute.xlu0 %264
        %266 = vrot.lane.b32.xlu0 %v251, 126
        %v267 = vpop.permute.xlu0 %266
        %v269 = vlaneseq
        %v270 = vshrl.u32 %v269, 7
        %v271 = vsub.s32 0, %v270
        %v272 = vrot.slane %v249, %v271
        %v274 = vmul.f32 %v265, %v272
        %v275 = vmul.f32 %v267, %v272
        %v276 = vpack.c.bf16 %v251, %v250
        %v277 = vpack.c.bf16 %v263, %v262
        %v278 = vpack.c.bf16 %v275, %v274
        %280 = vset.pattern.permute.xlu0 0
        %281 = vperm.xlu0 %280, %v246
        %v282 = vpop.permute.xlu0 %281
        %285 = vset.pattern.permute.xlu0 0
        %286 = vperm.xlu0 %285, %v247
        %v287 = vpop.permute.xlu0 %286
        %v291 = vunpack.c.l.b16 %v244
        %v292 = vunpack.c.l.b16 %v245
        %v293 = vpack.c.b16 %v292, %v291
        %vm294 = vcmask 392192
        %v296 = vsel %vm294, %v293, 0
        %298 = vmatprep.subr.bf16.mxu0 0
        %299 = vmatpush1.bf16.msra.mxu0 0
        %300 = vmatprep.subr.bf16.mxu0 0
        %301 = vmatpush1.bf16.msra.mxu0 0
        %302 = vmatprep.subr.bf16.mxu0 0
        %303 = vmatpush1.bf16.msra.mxu0 0
        %304 = vmatprep.subr.bf16.mxu0 0
        %305 = vmatpush1.bf16.msra.mxu0 0
        %306 = vmatprep.subr.bf16.mxu0 0
        %307 = vmatpush1.bf16.msra.mxu0 0
        %308 = vmatprep.subr.bf16.mxu0 0
        %309 = vmatpush1.bf16.msra.mxu0 %v278
        %310 = vmatprep.subr.bf16.mxu0 0
        %311 = vmatpush1.bf16.msra.mxu0 %v276
        %312 = vmatprep.subr.bf16.mxu0 0
        %313 = vmatpush1.bf16.msra.mxu0 %v277
        %314 = vmatprep.subr.bf16.mxu0 0
        %315 = vmatpush2.bf16.msra.mxu0 0
        %316 = vmatprep.subr.bf16.mxu0 0
        %317 = vmatpush2.bf16.msra.mxu0 0
        %318 = vmatprep.subr.bf16.mxu0 0
        %319 = vmatpush2.bf16.msra.mxu0 0
        %320 = vmatprep.subr.bf16.mxu0 0
        %321 = vmatpush2.bf16.msra.mxu0 0
        %322 = vmatprep.subr.bf16.mxu0 0
        %323 = vmatpush2.bf16.msra.mxu0 0
        %324 = vmatprep.subr.bf16.mxu0 0
        %325 = vmatpush2.bf16.msra.mxu0 0
        %326 = vmatprep.subr.bf16.mxu0 0
        %327 = vmatpush2.bf16.msra.mxu0 0
        %328 = vmatprep.subr.bf16.mxu0 0
        %329 = vmatpush2.bf16.msra.mxu0 0
        %330 = vmatprep.mubr.bf16.mxu0 0
        %331 = vmatmul.mubr.bf16.gmra.mxu0 %v296
        %v332 = vpop.f32.mrf.mxu0
        %v333 = vadd.f32 %v282, %v332
        %v334 = vpop.f32.mrf.mxu0
        %v335 = vpop.f32.mrf.mxu0
        %v336 = vadd.f32 %v287, %v335
        %v337 = vpop.f32.mrf.mxu0
        %338 = vdwg.mxu0
        %v339 = vadd.f32 %v333, %v250
        %v340 = vadd.f32 %v336, %v251
        %vm341 = vcmp.ge.f32.partialorder %v339, 0.0
        %vm342 = vcmp.ge.f32.partialorder %v340, 0.0
        %v343 = vmul.f32 %v339, 0.2
        %v344 = vmul.f32 %v340, 0.2
        %v345 = vsel %vm341, %v339, %v343
        %v346 = vsel %vm342, %v340, %v344
        %347 = vst [vmem:[%s242] sm:$0xff] %v345
        %348 = vst [vmem:[%s242 + $0x8] sm:$0xff] %v346
        %s349 = sand.u32 %s140, 1
        %s350 = scalar_lea.sflag [#allocation4], %s349
        %s351 = sand.u32 %s140, 1
        %s352 = smul.addr %s351, 16
        %s353 = scalar_lea.vmem [#allocation5], %s352
        // Predicated region
        $region45: #{tpu_custom_call.1} parent=39 // pred_check
          %p354 = pneg %p150
        $region46: #{tpu_custom_call.1} parent=39 // pred_check_branch
          %356 = sbr.rel (%p354) target = $region48
        $region47: #{tpu_custom_call.1} parent=39 // pred_region
          %s358 = ssub.s32 256, 256
          %359 = vsyncadd %s350, %s358
          %s360 = smul.addr %s22, 2
          %s361 = smul.addr %s360, 128
          %s362 = scalar_lea.hbm %s5, %s361
          %s363 = sshll.u32 %s353, 4
          %s364 = int_to_ptr.vmem [resolvable:$true] %s363
          %369 = dma.vmem_to_hbm [thread:$0]  %s364, 256, %s362, %s350, 128, 128, 8
        $region48: #{tpu_custom_call.1} parent=39 // pred_fallthru
          _
      $region40: #{tpu_custom_call.1} parent=5 // pred_fallthru
        _
      %p370 = scmp.le.s32.totalorder 2, %s17
      // Predicated region
      $region49: #{tpu_custom_call.1} parent=5 // pred_check
        %p371 = pneg %p370
      $region50: #{tpu_custom_call.1} parent=5 // pred_check_branch
        %373 = sbr.rel (%p371) target = $region52
      $region51: #{tpu_custom_call.1} parent=5 // pred_region
        %s374 = ssub.s32 %s17, 2
        // Predicated region
        $region53: #{tpu_custom_call.1} parent=51 // pred_check
          %p375 = pneg %p156
        $region54: #{tpu_custom_call.1} parent=51 // pred_check_branch
          %377 = sbr.rel (%p375) target = $region56
        $region55: #{tpu_custom_call.1} parent=51 // pred_region
          %s378 = sand.u32 %s141, 1
          %s379 = scalar_lea.sflag [#allocation4], %s378
          %s380 = sand.u32 %s141, 1
          %s381 = smul.addr %s380, 16
          %s382 = scalar_lea.vmem [#allocation5], %s381
          %383 = dma.done %s379, 256
        $region56: #{tpu_custom_call.1} parent=51 // pred_fallthru
          _
      $region52: #{tpu_custom_call.1} parent=5 // pred_fallthru
        _
    $region6: #{tpu_custom_call.1} parent=1 // loop_footer
      %s21 = sadd.s32 1, %s17
    $region7: #{tpu_custom_call.1} parent=1 // loop_footer_branch
      %16 = sbr.rel target = $region3
    $region8: #{tpu_custom_call.1} parent=1 // loop_exit
      _
    %384 = vsyncpa [#allocation3], 1
    %s385 = scalar_lea.sflag [#allocation3], 1
    %386 = vsyncpa %s385, 1
    %387 = vsyncpa [#allocation4], 1
    %s388 = scalar_lea.sflag [#allocation4], 1
    %389 = vsyncpa %s388, 1

</llo_original>
